<compile_context>
chip_gen: v5e
topology: v5e:2x2
jax: 0.10.0
libtpu: 0.0.40
codegen_flags: <defaults>
</compile_context>

<pallas_src>
import functools

import jax
import jax.numpy as jnp
from jax import lax
from jax.experimental import pallas as pl
from jax.experimental.pallas import tpu as pltpu

# -inf stand-in: exp(BIG_NEG - max) underflows to exactly 0, matching torch's -inf softmax
# as long as the target token lies inside the answer mask.  Plain Python float so it is an
# inline literal, not a captured device constant.
BIG_NEG = -1e30


def _sublane_multiple(itemsize: int) -> int:
    # f32 -> 8, bf16 -> 16, int8/fp8 -> 32 sublane packing.
    return 8 * max(1, 4 // max(1, itemsize))


def _choose_row_tile(n_rows: int, row_bytes: int, itemsize: int,
                     budget_bytes: int = 4 << 20) -> int:
    """Largest row-tile that divides n_rows, respects sublane packing and fits a VMEM budget."""
    min_sub = _sublane_multiple(itemsize)
    max_rows = max(min_sub, budget_bytes // max(1, row_bytes))
    best = None
    t = min_sub
    while t <= min(n_rows, max_rows):
        if n_rows % t == 0:
            best = t
        t += min_sub
    return best if best is not None else n_rows


# --------------------------------------------------------------------------------------
# Kernel 1: PrefixLoss pieces (fluency CE partial sums, masked token CE, n_correct).
# Grid = (B, S // S_TILE);   B is "parallel", S is the reduction ("arbitrary") axis.
# --------------------------------------------------------------------------------------
def prefix_loss_kernel(next_ids_sref,            # scalar-prefetch: (B,) i32 in SMEM
                       logits_ref,               # (1, S_TILE, V)  model dtype
                       targets_ref,              # (1, S_TILE, 1)  i32 (input_ids shifted by 1)
                       amask_ref,                # (1, V)          i32 (0/1 answer mask)
                       fl_ref,                   # out (1, 1, 1)   f32: per-batch fluency CE sum
                       tok_ref,                  # out (1, 1, 1)   f32: per-batch token CE
                       cor_ref,                  # out (1, 1, 1)   i32: per-batch correct flag
                       *, seq_len: int, s_tile: int):
    b = pl.program_id(0)
    s = pl.program_id(1)
    n_s = pl.num_programs(1)

    tile = logits_ref[0].astype(jnp.float32)             # (s_tile, V); bf16 -> f32 math
    V = tile.shape[-1]

    # ---------------- fluency CE partial sum for this tile's valid positions ----------
    tgt = targets_ref[0]                                  # (s_tile, 1) i32
    pos = s * s_tile + lax.broadcasted_iota(jnp.int32, (s_tile, 1), 0)
    valid = pos < (seq_len - 1)                           # last sequence position excluded

    m = jnp.max(tile, axis=-1, keepdims=True)             # (s_tile, 1)
    lse = m + jnp.log(jnp.sum(jnp.exp(tile - m), axis=-1, keepdims=True))
    iota_v = lax.broadcasted_iota(jnp.int32, (s_tile, V), 1)
    tgt_logit = jnp.sum(jnp.where(iota_v == tgt, tile, 0.0), axis=-1, keepdims=True)
    partial = jnp.sum(jnp.where(valid, lse - tgt_logit, 0.0))   # scalar

    @pl.when(s == 0)
    def _():
        fl_ref[...] = jnp.zeros_like(fl_ref)

    fl_ref[...] += partial

    # ---------------- last seq tile: masked token CE + n_correct ----------------------
    @pl.when(s == n_s - 1)
    def _():
        nt = tile[s_tile - 1:s_tile, :]                   # (1, V) unmasked next-token logits
        next_id = next_ids_sref[b]                        # scalar i32 from SMEM
        amask = amask_ref[...] != 0                       # (1, V) bool

        masked = jnp.where(amask, nt, BIG_NEG)
        m2 = jnp.max(masked, axis=-1, keepdims=True)      # (1, 1)
        lse2 = m2 + jnp.log(jnp.sum(jnp.exp(masked - m2), axis=-1, keepdims=True))
        iv = lax.broadcasted_iota(jnp.int32, (1, V), 1)
        tgt2 = jnp.sum(jnp.where(iv == next_id, masked, 0.0), axis=-1, keepdims=True)
        tok_ref[...] = (lse2 - tgt2).reshape(1, 1, 1)

        # argmax with first-index tie-breaking (matches torch.argmax / jnp.argmax)
        row_max = jnp.max(nt, axis=-1, keepdims=True)
        first_idx = jnp.min(jnp.where(nt >= row_max, iv, V), axis=-1, keepdims=True)  # (1,1)
        cor_ref[...] = (first_idx == next_id).astype(jnp.int32).reshape(1, 1, 1)


def prefix_loss(logits, input_ids, next_token_ids, answer_mask, gamma, *, s_tile=None):
    """logits: (B,S,V) f32/bf16 (passed as-is, no upcast); input_ids: (B,S) int;
    next_token_ids: (B,) int; answer_mask: (V,) bool; gamma: Python float.
    Returns (loss scalar f32, n_correct scalar i32)."""
    B, S, V = logits.shape
    itemsize = jnp.dtype(logits.dtype).itemsize
    min_sub = _sublane_multiple(itemsize)
    if s_tile is None:
        s_tile = _choose_row_tile(S, V * itemsize, itemsize)
    assert S % s_tile == 0, "sequence length must be divisible by the S tile"
    assert s_tile == S or s_tile % min_sub == 0, "S tile must respect sublane packing"
    n_s = S // s_tile

    input_ids = input_ids.astype(jnp.int32)
    # fluency targets: targets[b, s] = input_ids[b, s + 1]; last position is masked in-kernel.
    targets = jnp.concatenate(
        [input_ids[:, 1:], jnp.zeros((B, 1), jnp.int32)], axis=1).reshape(B, S, 1)
    next_ids = next_token_ids.astype(jnp.int32).reshape(B)
    amask = answer_mask.astype(jnp.int32).reshape(1, V)

    kernel = functools.partial(prefix_loss_kernel, seq_len=S, s_tile=s_tile)

    tile_bytes = s_tile * V * itemsize
    compiler_params = pltpu.CompilerParams(
        dimension_semantics=("parallel", "arbitrary"),     # B across cores, S = reduction
        vmem_limit_bytes=int(min(48 << 20, max(16 << 20, 8 * tile_bytes))),
    )
    cost = pl.CostEstimate(
        flops=int(6 * B * S * V),
        transcendentals=int(B * S * V),
        bytes_accessed=int(B * S * V * itemsize + B * S * 4 + V * 4 + 3 * B * 4),
    )

    fl_sum, tok, cor = pl.pallas_call(
        kernel,
        out_shape=(
            jax.ShapeDtypeStruct((B, 1, 1), jnp.float32),   # per-batch fluency CE sum
            jax.ShapeDtypeStruct((B, 1, 1), jnp.float32),   # per-batch masked token CE
            jax.ShapeDtypeStruct((B, 1, 1), jnp.int32),     # per-batch correct flag
        ),
        grid_spec=pltpu.PrefetchScalarGridSpec(
            num_scalar_prefetch=1,                          # next_token_ids -> SMEM
            grid=(B, n_s),
            in_specs=[
                pl.BlockSpec((1, s_tile, V), lambda b, s, *_: (b, s, 0)),   # logits tile
                pl.BlockSpec((1, s_tile, 1), lambda b, s, *_: (b, s, 0)),   # shifted ids
                pl.BlockSpec((1, V), lambda b, s, *_: (0, 0)),              # answer mask
            ],
            out_specs=(
                pl.BlockSpec((1, 1, 1), lambda b, s, *_: (b, 0, 0)),
                pl.BlockSpec((1, 1, 1), lambda b, s, *_: (b, 0, 0)),
                pl.BlockSpec((1, 1, 1), lambda b, s, *_: (b, 0, 0)),
            ),
        ),
        compiler_params=compiler_params,
        cost_estimate=cost,
    )(next_ids, logits, targets, amask)

    fluency_loss = jnp.sum(fl_sum) / jnp.float32(B * (S - 1))
    token_loss = jnp.mean(tok)
    if gamma == 0:                       # PrefixLoss._compute_fluency_loss short-circuit
        loss = token_loss
    else:
        loss = token_loss + jnp.float32(gamma) * fluency_loss
    n_correct = jnp.sum(cor)
    return loss, n_correct


# --------------------------------------------------------------------------------------
# Kernel 2: init_continuous_prefix -> mean of embedding table over the vocab axis,
# tiled over vocab rows with accumulate/finalize so huge tables stream through VMEM.
# --------------------------------------------------------------------------------------
def embed_mean_kernel(emb_ref, out_ref, *, n_rows: int):
    v = pl.program_id(0)

    @pl.when(v == 0)
    def _():
        out_ref[...] = jnp.zeros_like(out_ref)

    out_ref[...] += jnp.sum(emb_ref[...].astype(jnp.float32), axis=0, keepdims=True)

    @pl.when(v == pl.num_programs(0) - 1)
    def _():
        out_ref[...] *= (1.0 / n_rows)


def init_continuous_prefix(token_embedding, num_tokens, *, v_tile=None):
    """token_embedding: (V, D). Returns (1, num_tokens, D), matching
    weight.mean(dim=0, keepdim=True)[None].repeat(1, num_tokens, 1)."""
    V, D = token_embedding.shape
    itemsize = jnp.dtype(token_embedding.dtype).itemsize
    min_sub = _sublane_multiple(itemsize)
    if v_tile is None:
        v_tile = _choose_row_tile(V, D * itemsize, itemsize)
    assert V % v_tile == 0
    assert v_tile == V or v_tile % min_sub == 0
    n_v = V // v_tile

    mean = pl.pallas_call(
        functools.partial(embed_mean_kernel, n_rows=V),
        out_shape=jax.ShapeDtypeStruct((1, D), jnp.float32),
        grid_spec=pltpu.PrefetchScalarGridSpec(
            num_scalar_prefetch=0,
            grid=(n_v,),
            in_specs=[pl.BlockSpec((v_tile, D), lambda v: (v, 0))],
            out_specs=pl.BlockSpec((1, D), lambda v: (0, 0)),
        ),
        compiler_params=pltpu.CompilerParams(
            dimension_semantics=("arbitrary",),
            vmem_limit_bytes=int(min(48 << 20, max(16 << 20, 8 * v_tile * D * itemsize))),
        ),
        cost_estimate=pl.CostEstimate(
            flops=int(V * D), transcendentals=0,
            bytes_accessed=int(V * D * itemsize + D * 4)),
    )(token_embedding)

    prefix = jnp.tile(mean[None], (1, num_tokens, 1))       # (1, num_tokens, D)
    return prefix.astype(token_embedding.dtype)


# --------------------------------------------------------------------------------------
# Pure-JAX reference (mirrors the PyTorch code) for correctness checks.
# --------------------------------------------------------------------------------------
def _reference_loss(logits, input_ids, next_token_ids, answer_mask, gamma):
    fl_logits = logits[:, :-1, :]
    fl_targets = input_ids[:, 1:]
    logp = jax.nn.log_softmax(fl_logits, axis=-1)
    fl = -jnp.mean(jnp.take_along_axis(logp, fl_targets[..., None], axis=-1))
    nt = logits[:, -1, :]
    masked = jnp.where(answer_mask[None, :], nt, -jnp.inf)
    logp2 = jax.nn.log_softmax(masked, axis=-1)
    tok = -jnp.mean(jnp.take_along_axis(logp2, next_token_ids[:, None], axis=-1))
    loss = tok + gamma * fl
    n_correct = jnp.sum((jnp.argmax(nt, axis=-1) == next_token_ids).astype(jnp.int32))
    return loss, n_correct


if __name__ == "__main__":
    key = jax.random.PRNGKey(0)
    B, S, V, D, NUM_PREFIX_TOKENS = 2, 32, 128, 32, 4
    GAMMA = 0.5

    k1, k2, k3, k4 = jax.random.split(key, 4)
    logits = jax.random.normal(k1, (B, S, V), dtype=jnp.float32)
    input_ids = jax.random.randint(k2, (B, S), 0, V, dtype=jnp.int32)
    # keep targets inside the allowed-answer set so the masked CE is finite
    next_token_ids = jax.random.randint(k3, (B,), 0, V // 2, dtype=jnp.int32)
    answer_mask = jnp.arange(V) < (V // 2)                  # (V,) bool
    token_embedding = jax.random.normal(k4, (V, D), dtype=jnp.float32)

    # f32 path — s_tile=16 / v_tile=64 exercise the multi-step reduction grids.
    loss, n_correct = prefix_loss(logits, input_ids, next_token_ids, answer_mask,
                                  GAMMA, s_tile=16)
    prefix_param = init_continuous_prefix(token_embedding, NUM_PREFIX_TOKENS, v_tile=64)
    jax.block_until_ready((loss, n_correct, prefix_param))

    ref_loss, ref_nc = _reference_loss(logits, input_ids, next_token_ids, answer_mask, GAMMA)
    ref_prefix = jnp.tile(jnp.mean(token_embedding, axis=0, keepdims=True)[None],
                          (1, NUM_PREFIX_TOKENS, 1))
    assert jnp.allclose(loss, ref_loss, rtol=1e-5, atol=1e-5), (loss, ref_loss)
    assert int(n_correct) == int(ref_nc), (n_correct, ref_nc)
    assert jnp.allclose(prefix_param, ref_prefix, rtol=1e-5, atol=1e-6)
    assert prefix_param.shape == (1, NUM_PREFIX_TOKENS, D)

    # bf16 path — no wrapper upcast, kernel casts per tile; compare against the reference
    # evaluated on the same bf16-quantized logits.
    logits_bf16 = logits.astype(jnp.bfloat16)
    loss_bf, nc_bf = prefix_loss(logits_bf16, input_ids, next_token_ids, answer_mask,
                                 GAMMA, s_tile=16)
    jax.block_until_ready((loss_bf, nc_bf))
    ref_loss_bf, ref_nc_bf = _reference_loss(logits_bf16.astype(jnp.float32), input_ids,
                                             next_token_ids, answer_mask, GAMMA)
    assert jnp.allclose(loss_bf, ref_loss_bf, rtol=1e-4, atol=1e-4), (loss_bf, ref_loss_bf)
    assert int(nc_bf) == int(ref_nc_bf), (nc_bf, ref_nc_bf)

    print("KERNEL_OK")
</pallas_src>

<mosaic_0001>
module attributes {stable_mosaic.version = 11 : i64} {
  func.func @prefix_loss_kernel(%arg0: i32, %arg1: i32, %arg2: memref<2xi32, #tpu.memory_space<smem>>, %arg3: memref<1x16x128xf32, #tpu.memory_space<vmem>>, %arg4: memref<1x16x1xi32, #tpu.memory_space<vmem>>, %arg5: memref<1x128xi32, #tpu.memory_space<vmem>>, %arg6: memref<1x1x1xf32, #tpu.memory_space<vmem>>, %arg7: memref<1x1x1xf32, #tpu.memory_space<vmem>>, %arg8: memref<1x1x1xi32, #tpu.memory_space<vmem>>) attributes {dimension_semantics = [#tpu.dimension_semantics<parallel>, #tpu.dimension_semantics<arbitrary>], iteration_bounds = array<i64: 2, 2>, scalar_prefetch = 1 : i64, scratch_operands = 0 : i64, tpu.core_type = #tpu.core_type<tc>, window_params = [{transform_indices = @transform_0, window_bounds = array<i64: 1, 16, 128>}, {transform_indices = @transform_1, window_bounds = array<i64: 1, 16, 1>}, {pipeline_mode = #tpu.pipeline_mode<synchronous>, transform_indices = @transform_2, window_bounds = array<i64: 1, 128>}, {transform_indices = @transform_3, window_bounds = array<i64: 1, 1, 1>}, {transform_indices = @transform_4, window_bounds = array<i64: 1, 1, 1>}, {transform_indices = @transform_5, window_bounds = array<i64: 1, 1, 1>}]} {
    %c0 = arith.constant 0 : index
    %c0_0 = arith.constant 0 : index
    %c0_1 = arith.constant 0 : index
    %0 = vector.load %arg3[%c0, %c0_0, %c0_1] : memref<1x16x128xf32, #tpu.memory_space<vmem>>, vector<1x16x128xf32>
    %1 = vector.shape_cast %0 : vector<1x16x128xf32> to vector<16x128xf32>
    %c0_2 = arith.constant 0 : index
    %c0_3 = arith.constant 0 : index
    %c0_4 = arith.constant 0 : index
    %2 = vector.load %arg4[%c0_2, %c0_3, %c0_4] : memref<1x16x1xi32, #tpu.memory_space<vmem>>, vector<1x16x1xi32>
    %3 = vector.shape_cast %2 : vector<1x16x1xi32> to vector<16x1xi32>
    %c16_i32 = arith.constant 16 : i32
    %4 = arith.muli %arg1, %c16_i32 : i32
    %5 = tpu.iota {dimensions = array<i32: 0>} : vector<16x1xi32>
    %6 = vector.broadcast %4 : i32 to vector<16x1xi32>
    %7 = arith.addi %6, %5 : vector<16x1xi32>
    %c31_i32 = arith.constant 31 : i32
    %8 = vector.broadcast %c31_i32 : i32 to vector<16x1xi32>
    %9 = arith.cmpi slt, %7, %8 : vector<16x1xi32>
    %cst = arith.constant dense<0xFF800000> : vector<16xf32>
    %10 = vector.multi_reduction <maximumf>, %1, %cst [1] : vector<16x128xf32> to vector<16xf32>
    %11 = vector.shape_cast %10 : vector<16xf32> to vector<16x1xf32>
    %12 = vector.broadcast %11 : vector<16x1xf32> to vector<16x128xf32>
    %13 = arith.subf %1, %12 : vector<16x128xf32>
    %14 = math.exp %13 : vector<16x128xf32>
    %cst_5 = arith.constant dense<0.000000e+00> : vector<16xf32>
    %15 = vector.multi_reduction <add>, %14, %cst_5 [1] : vector<16x128xf32> to vector<16xf32>
    %16 = vector.shape_cast %15 : vector<16xf32> to vector<16x1xf32>
    %17 = math.log %16 : vector<16x1xf32>
    %18 = arith.addf %11, %17 : vector<16x1xf32>
    %19 = tpu.iota {dimensions = array<i32: 1>} : vector<16x128xi32>
    %20 = vector.broadcast %3 : vector<16x1xi32> to vector<16x128xi32>
    %21 = arith.cmpi eq, %19, %20 : vector<16x128xi32>
    %cst_6 = arith.constant 0.000000e+00 : f32
    %22 = vector.broadcast %cst_6 : f32 to vector<16x128xf32>
    %23 = arith.select %21, %1, %22 : vector<16x128xi1>, vector<16x128xf32>
    %cst_7 = arith.constant dense<0.000000e+00> : vector<16xf32>
    %24 = vector.multi_reduction <add>, %23, %cst_7 [1] : vector<16x128xf32> to vector<16xf32>
    %25 = vector.shape_cast %24 : vector<16xf32> to vector<16x1xf32>
    %26 = arith.subf %18, %25 : vector<16x1xf32>
    %cst_8 = arith.constant 0.000000e+00 : f32
    %27 = vector.broadcast %cst_8 : f32 to vector<16x1xf32>
    %28 = arith.select %9, %26, %27 : vector<16x1xi1>, vector<16x1xf32>
    %29 = vector.shape_cast %28 : vector<16x1xf32> to vector<1x16x1xf32>
    %cst_9 = arith.constant dense<0.000000e+00> : vector<1xf32>
    %30 = vector.multi_reduction <add>, %29, %cst_9 [1, 2] : vector<1x16x1xf32> to vector<1xf32>
    %31 = vector.shape_cast %30 : vector<1xf32> to vector<1x1x1xf32>
    %32 = vector.extract %31[0, 0, 0] : f32 from vector<1x1x1xf32>
    %c0_i32 = arith.constant 0 : i32
    %33 = arith.cmpi eq, %arg1, %c0_i32 : i32
    %34 = arith.extui %33 : i1 to i32
    %c0_i32_10 = arith.constant 0 : i32
    %35 = arith.cmpi ne, %34, %c0_i32_10 : i32
    scf.if %35 {
      %cst_18 = arith.constant 0.000000e+00 : f32
      %43 = vector.broadcast %cst_18 : f32 to vector<1x1x1xf32>
      %c0_19 = arith.constant 0 : index
      %c0_20 = arith.constant 0 : index
      %c0_21 = arith.constant 0 : index
      %44 = vector.load %arg6[%c0_19, %c0_20, %c0_21] : memref<1x1x1xf32, #tpu.memory_space<vmem>>, vector<1x1x1xf32>
      tpu.vector_store %arg6[%c0_19, %c0_20, %c0_21], %43 {strides = array<i32>} : memref<1x1x1xf32, #tpu.memory_space<vmem>>, vector<1x1x1xf32>,
    } else {
    }
    %c0_11 = arith.constant 0 : index
    %c0_12 = arith.constant 0 : index
    %c0_13 = arith.constant 0 : index
    %36 = vector.load %arg6[%c0_11, %c0_12, %c0_13] : memref<1x1x1xf32, #tpu.memory_space<vmem>>, vector<1x1x1xf32>
    %37 = vector.broadcast %32 : f32 to vector<1x1x1xf32>
    %38 = arith.addf %36, %37 : vector<1x1x1xf32>
    %c0_14 = arith.constant 0 : index
    %c0_15 = arith.constant 0 : index
    %c0_16 = arith.constant 0 : index
    %39 = vector.load %arg6[%c0_14, %c0_15, %c0_16] : memref<1x1x1xf32, #tpu.memory_space<vmem>>, vector<1x1x1xf32>
    tpu.vector_store %arg6[%c0_14, %c0_15, %c0_16], %38 {strides = array<i32>} : memref<1x1x1xf32, #tpu.memory_space<vmem>>, vector<1x1x1xf32>,
    %c1_i32 = arith.constant 1 : i32
    %40 = arith.cmpi eq, %arg1, %c1_i32 : i32
    %41 = arith.extui %40 : i1 to i32
    %c0_i32_17 = arith.constant 0 : i32
    %42 = arith.cmpi ne, %41, %c0_i32_17 : i32
    scf.if %42 {
      %43 = vector.extract_strided_slice %1 {offsets = [15, 0], sizes = [1, 128], strides = [1, 1]} : vector<16x128xf32> to vector<1x128xf32>
      %44 = arith.index_cast %arg0 : i32 to index
      %45 = memref.load %arg2[%44] : memref<2xi32, #tpu.memory_space<smem>>
      %c0_18 = arith.constant 0 : index
      %c0_19 = arith.constant 0 : index
      %46 = vector.load %arg5[%c0_18, %c0_19] : memref<1x128xi32, #tpu.memory_space<vmem>>, vector<1x128xi32>
      %c0_i32_20 = arith.constant 0 : i32
      %47 = vector.broadcast %c0_i32_20 : i32 to vector<1x128xi32>
      %48 = arith.cmpi ne, %46, %47 : vector<1x128xi32>
      %cst_21 = arith.constant -1.000000e+30 : f32
      %49 = vector.broadcast %cst_21 : f32 to vector<1x128xf32>
      %50 = arith.select %48, %43, %49 : vector<1x128xi1>, vector<1x128xf32>
      %cst_22 = arith.constant dense<0xFF800000> : vector<1xf32>
      %51 = vector.multi_reduction <maximumf>, %50, %cst_22 [1] : vector<1x128xf32> to vector<1xf32>
      %52 = vector.shape_cast %51 : vector<1xf32> to vector<1x1xf32>
      %53 = vector.broadcast %52 : vector<1x1xf32> to vector<1x128xf32>
      %54 = arith.subf %50, %53 : vector<1x128xf32>
      %55 = math.exp %54 : vector<1x128xf32>
      %cst_23 = arith.constant dense<0.000000e+00> : vector<1xf32>
      %56 = vector.multi_reduction <add>, %55, %cst_23 [1] : vector<1x128xf32> to vector<1xf32>
      %57 = vector.shape_cast %56 : vector<1xf32> to vector<1x1xf32>
      %58 = math.log %57 : vector<1x1xf32>
      %59 = arith.addf %52, %58 : vector<1x1xf32>
      %60 = tpu.iota {dimensions = array<i32: 1>} : vector<1x128xi32>
      %61 = vector.broadcast %45 : i32 to vector<1x128xi32>
      %62 = arith.cmpi eq, %60, %61 : vector<1x128xi32>
      %cst_24 = arith.constant 0.000000e+00 : f32
      %63 = vector.broadcast %cst_24 : f32 to vector<1x128xf32>
      %64 = arith.select %62, %50, %63 : vector<1x128xi1>, vector<1x128xf32>
      %cst_25 = arith.constant dense<0.000000e+00> : vector<1xf32>
      %65 = vector.multi_reduction <add>, %64, %cst_25 [1] : vector<1x128xf32> to vector<1xf32>
      %66 = vector.shape_cast %65 : vector<1xf32> to vector<1x1xf32>
      %67 = arith.subf %59, %66 : vector<1x1xf32>
      %68 = vector.shape_cast %67 : vector<1x1xf32> to vector<1x1x1xf32>
      %c0_26 = arith.constant 0 : index
      %c0_27 = arith.constant 0 : index
      %c0_28 = arith.constant 0 : index
      %69 = vector.load %arg7[%c0_26, %c0_27, %c0_28] : memref<1x1x1xf32, #tpu.memory_space<vmem>>, vector<1x1x1xf32>
      tpu.vector_store %arg7[%c0_26, %c0_27, %c0_28], %68 {strides = array<i32>} : memref<1x1x1xf32, #tpu.memory_space<vmem>>, vector<1x1x1xf32>,
      %cst_29 = arith.constant dense<0xFF800000> : vector<1xf32>
      %70 = vector.multi_reduction <maximumf>, %43, %cst_29 [1] : vector<1x128xf32> to vector<1xf32>
      %71 = vector.shape_cast %70 : vector<1xf32> to vector<1x1xf32>
      %72 = vector.broadcast %71 : vector<1x1xf32> to vector<1x128xf32>
      %73 = arith.cmpf oge, %43, %72 : vector<1x128xf32>
      %c128_i32 = arith.constant 128 : i32
      %74 = vector.broadcast %c128_i32 : i32 to vector<1x128xi32>
      %75 = arith.select %73, %60, %74 : vector<1x128xi1>, vector<1x128xi32>
      %cst_30 = arith.constant dense<2147483647> : vector<1xi32>
      %76 = vector.multi_reduction <minsi>, %75, %cst_30 [1] : vector<1x128xi32> to vector<1xi32>
      %77 = vector.shape_cast %76 : vector<1xi32> to vector<1x1xi32>
      %78 = vector.broadcast %45 : i32 to vector<1x1xi32>
      %79 = arith.cmpi eq, %77, %78 : vector<1x1xi32>
      %80 = arith.extui %79 : vector<1x1xi1> to vector<1x1xi32>
      %81 = vector.shape_cast %80 : vector<1x1xi32> to vector<1x1x1xi32>
      %c0_31 = arith.constant 0 : index
      %c0_32 = arith.constant 0 : index
      %c0_33 = arith.constant 0 : index
      %82 = vector.load %arg8[%c0_31, %c0_32, %c0_33] : memref<1x1x1xi32, #tpu.memory_space<vmem>>, vector<1x1x1xi32>
      tpu.vector_store %arg8[%c0_31, %c0_32, %c0_33], %81 {strides = array<i32>} : memref<1x1x1xi32, #tpu.memory_space<vmem>>, vector<1x1x1xi32>,
    } else {
    }
    return
  }
  func.func @transform_0(%arg0: i32, %arg1: i32, %arg2: memref<2xi32, #tpu.memory_space<smem>>) -> (i32, i32, i32) {
    %c0_i32 = arith.constant 0 : i32
    %c0_i32_0 = arith.constant 0 : i32
    return %arg0, %arg1, %c0_i32 : i32, i32, i32
  }
  func.func @transform_1(%arg0: i32, %arg1: i32, %arg2: memref<2xi32, #tpu.memory_space<smem>>) -> (i32, i32, i32) {
    %c0_i32 = arith.constant 0 : i32
    %c0_i32_0 = arith.constant 0 : i32
    return %arg0, %arg1, %c0_i32 : i32, i32, i32
  }
  func.func @transform_2(%arg0: i32, %arg1: i32, %arg2: memref<2xi32, #tpu.memory_space<smem>>) -> (i32, i32) {
    %c0_i32 = arith.constant 0 : i32
    %c0_i32_0 = arith.constant 0 : i32
    %c0_i32_1 = arith.constant 0 : i32
    return %c0_i32, %c0_i32_0 : i32, i32
  }
  func.func @transform_3(%arg0: i32, %arg1: i32, %arg2: memref<2xi32, #tpu.memory_space<smem>>) -> (i32, i32, i32) {
    %c0_i32 = arith.constant 0 : i32
    %c0_i32_0 = arith.constant 0 : i32
    %c0_i32_1 = arith.constant 0 : i32
    return %arg0, %c0_i32, %c0_i32_0 : i32, i32, i32
  }
  func.func @transform_4(%arg0: i32, %arg1: i32, %arg2: memref<2xi32, #tpu.memory_space<smem>>) -> (i32, i32, i32) {
    %c0_i32 = arith.constant 0 : i32
    %c0_i32_0 = arith.constant 0 : i32
    %c0_i32_1 = arith.constant 0 : i32
    return %arg0, %c0_i32, %c0_i32_0 : i32, i32, i32
  }
  func.func @transform_5(%arg0: i32, %arg1: i32, %arg2: memref<2xi32, #tpu.memory_space<smem>>) -> (i32, i32, i32) {
    %c0_i32 = arith.constant 0 : i32
    %c0_i32_0 = arith.constant 0 : i32
    %c0_i32_1 = arith.constant 0 : i32
    return %arg0, %c0_i32, %c0_i32_0 : i32, i32, i32
  }
}

</mosaic_0001>

<llo_original>
// kernel: tpu_custom_call.1
$region0: #{tpu_custom_call.1}
  #allocation0 [shape = 'u32[]', space=smem, size = 0x4, offset = 0x4, fixed_abs, tag = 'smem constant byte address 0x4 - core index']
  #allocation1 [shape = 'u32[72,128]{1,0:T(1,128)}', space=vmem, size = 0x9000, scoped, tag = 'internal scratch']
  #allocation2 [shape = 's32[1]{0}', space=sflag, size = 0x4, scoped, tag = 'scoped memory for tpu_custom_call.1']
  #allocation3 [shape = 'u8[512]{0}', space=smem, size = 0x200, scoped, tag = 'prefetched SMEM operand 0']
  %s0 = inlined_call_operand.vmem [shape: s32[2], index: 0, kind: input, shape index: {}]
  %s1 = inlined_call_operand.vmem [shape: f32[2,32,128], index: 1, kind: input, shape index: {}]
  %s2 = inlined_call_operand.vmem [shape: s32[2,32,1], index: 2, kind: input, shape index: {}]
  %s3 = inlined_call_operand.vmem [shape: s32[1,128], index: 3, kind: input, shape index: {}]
  %s4 = inlined_call_operand.vmem [shape: f32[2,1,1], index: 4, kind: output, shape index: {0}]
  %s5 = inlined_call_operand.vmem [shape: f32[2,1,1], index: 5, kind: output, shape index: {1}]
  %s6 = inlined_call_operand.vmem [shape: s32[2,1,1], index: 6, kind: output, shape index: {2}]
  %7 = xla_tuple %s4, %s5, %s6
  %s8 = sld [smem:[#allocation0]]
  $region69: #{tpu_custom_call.1} parent=0
    _
  %s10 = ssub.s32 1, %s8
  %s11 = scalar_select 0, %s10, %s8
  %s13 = sshll.u32 %s0, 4
  %s14 = int_to_ptr.vmem [resolvable:$true] %s13
  %16 = dma.vmem_to_smem %s14, 16, [#allocation3], [#allocation2]
  %18 = dma.done [#allocation2], 16
  %19 = sfence
  loop: start=0, step=1, limit=6
  $region2: #{tpu_custom_call.1} parent=0 // loop_pre_header
    _
  $region3: #{tpu_custom_call.1} parent=0 // loop_header
    %s21 = sphi 0, %s25
    %p22 = scmp.ge.s32.totalorder %s21, 6
    %s28 = sphi 0, %s40
    %s29 = sphi 0, %s36
    %s30 = sphi 0, %s28
    %s31 = sphi 0, %s29
    %s32 = sphi 0, %s30
    %s33 = sphi 0, %s31
    %s45 = sphi 0, %s47
    %s48 = sphi 0, %s45
    %s49 = sphi 0, %s48
    %s65 = sphi 0, %s49
    %s73 = sphi 0, %s75
    %s76 = sphi 0, %s73
    %s77 = sphi 0, %s76
    %s93 = sphi 0, %s77
    %s97 = sphi 0, %s97
    %s99 = sphi 0, %s97
    %s100 = sphi 0, %s99
    %s114 = sphi 0, %s100
    %s120 = sphi 0, %s122
    %s123 = sphi 0, %s120
    %s124 = sphi 0, %s123
    %s140 = sphi 0, %s124
    %s146 = sphi 0, %s148
    %s149 = sphi 0, %s146
    %s150 = sphi 0, %s149
    %s166 = sphi 0, %s150
    %s172 = sphi 0, %s174
    %s175 = sphi 0, %s172
    %s176 = sphi 0, %s175
    %s192 = sphi 0, %s176
  $region4: #{tpu_custom_call.1} parent=0 // loop_header_branch
    %24 = sbr.rel (%p22) target = $region8
  $region5: #{tpu_custom_call.1} parent=0 // loop_body
    %s26 = ssub.s32 %s21, 1
    %s27 = ssub.s32 %s21, 2
    %s34 = sadd.s32 1, %s29
    %p35 = scmp.ge.s32.totalorder %s34, 2
    %s36 = scalar_select %p35, 0, %s34
    %s37 = sadd.s32 1, %s28
    %s38 = scalar_select %p35, %s37, %s28
    %p39 = scmp.ge.s32.totalorder %s38, 2
    %s40 = scalar_select %p39, 0, %s38
    %s41 = ssub.s32 %s28, %s40
    %s42 = ssub.s32 %s29, %s36
    %s43 = sor.u32 %s41, %s42
    %p44 = scmp.eq.s32.totalorder %s43, 0
    %s46 = sadd.s32 %s45, 1
    %s47 = scalar_select %p44, %s45, %s46
    %p50 = pneg %p44
    %p51 = scmp.eq.s32.totalorder %s21, 3
    %p52 = por %p50, %p51
    %p53 = scmp.ne.s32.totalorder %s45, %s48
    %p54 = scmp.eq.s32.totalorder %s21, 0
    %p55 = por %p53, %p54
    %p56 = scmp.ne.s32.totalorder %s45, %s48
    %p57 = scmp.eq.s32.totalorder %s26, 3
    %p58 = por %p56, %p57
    %p59 = scmp.ne.s32.totalorder %s48, %s49
    %p60 = scmp.eq.s32.totalorder %s26, 0
    %p61 = por %p59, %p60
    %p62 = scmp.ne.s32.totalorder %s48, %s49
    %p63 = scmp.eq.s32.totalorder %s27, 3
    %p64 = por %p62, %p63
    %p66 = scmp.ne.s32.totalorder %s49, %s65
    %p67 = scmp.eq.s32.totalorder %s27, 0
    %p68 = por %p66, %p67
    %s69 = ssub.s32 %s28, %s40
    %s70 = ssub.s32 %s29, %s36
    %s71 = sor.u32 %s69, %s70
    %p72 = scmp.eq.s32.totalorder %s71, 0
    %s74 = sadd.s32 %s73, 1
    %s75 = scalar_select %p72, %s73, %s74
    %p78 = pneg %p72
    %p79 = scmp.eq.s32.totalorder %s21, 3
    %p80 = por %p78, %p79
    %p81 = scmp.ne.s32.totalorder %s73, %s76
    %p82 = scmp.eq.s32.totalorder %s21, 0
    %p83 = por %p81, %p82
    %p84 = scmp.ne.s32.totalorder %s73, %s76
    %p85 = scmp.eq.s32.totalorder %s26, 3
    %p86 = por %p84, %p85
    %p87 = scmp.ne.s32.totalorder %s76, %s77
    %p88 = scmp.eq.s32.totalorder %s26, 0
    %p89 = por %p87, %p88
    %p90 = scmp.ne.s32.totalorder %s76, %s77
    %p91 = scmp.eq.s32.totalorder %s27, 3
    %p92 = por %p90, %p91
    %p94 = scmp.ne.s32.totalorder %s77, %s93
    %p95 = scmp.eq.s32.totalorder %s27, 0
    %p96 = por %p94, %p95
    %s98 = sadd.s32 %s97, 1
    %p101 = scmp.eq.s32.totalorder %s21, 3
    %p102 = scmp.ne.s32.totalorder %s97, %s99
    %p103 = scmp.eq.s32.totalorder %s21, 0
    %p104 = por %p102, %p103
    %p105 = scmp.ne.s32.totalorder %s97, %s99
    %p106 = scmp.eq.s32.totalorder %s26, 3
    %p107 = por %p105, %p106
    %p108 = scmp.ne.s32.totalorder %s99, %s100
    %p109 = scmp.eq.s32.totalorder %s26, 0
    %p110 = por %p108, %p109
    %p111 = scmp.ne.s32.totalorder %s99, %s100
    %p112 = scmp.eq.s32.totalorder %s27, 3
    %p113 = por %p111, %p112
    %p115 = scmp.ne.s32.totalorder %s100, %s114
    %p116 = scmp.eq.s32.totalorder %s27, 0
    %p117 = por %p115, %p116
    %s118 = ssub.s32 %s28, %s40
    %p119 = scmp.eq.s32.totalorder %s118, 0
    %s121 = sadd.s32 %s120, 1
    %s122 = scalar_select %p119, %s120, %s121
    %p125 = pneg %p119
    %p126 = scmp.eq.s32.totalorder %s21, 3
    %p127 = por %p125, %p126
    %p128 = scmp.ne.s32.totalorder %s120, %s123
    %p129 = scmp.eq.s32.totalorder %s21, 0
    %p130 = por %p128, %p129
    %p131 = scmp.ne.s32.totalorder %s120, %s123
    %p132 = scmp.eq.s32.totalorder %s26, 3
    %p133 = por %p131, %p132
    %p134 = scmp.ne.s32.totalorder %s123, %s124
    %p135 = scmp.eq.s32.totalorder %s26, 0
    %p136 = por %p134, %p135
    %p137 = scmp.ne.s32.totalorder %s123, %s124
    %p138 = scmp.eq.s32.totalorder %s27, 3
    %p139 = por %p137, %p138
    %p141 = scmp.ne.s32.totalorder %s124, %s140
    %p142 = scmp.eq.s32.totalorder %s27, 0
    %p143 = por %p141, %p142
    %s144 = ssub.s32 %s28, %s40
    %p145 = scmp.eq.s32.totalorder %s144, 0
    %s147 = sadd.s32 %s146, 1
    %s148 = scalar_select %p145, %s146, %s147
    %p151 = pneg %p145
    %p152 = scmp.eq.s32.totalorder %s21, 3
    %p153 = por %p151, %p152
    %p154 = scmp.ne.s32.totalorder %s146, %s149
    %p155 = scmp.eq.s32.totalorder %s21, 0
    %p156 = por %p154, %p155
    %p157 = scmp.ne.s32.totalorder %s146, %s149
    %p158 = scmp.eq.s32.totalorder %s26, 3
    %p159 = por %p157, %p158
    %p160 = scmp.ne.s32.totalorder %s149, %s150
    %p161 = scmp.eq.s32.totalorder %s26, 0
    %p162 = por %p160, %p161
    %p163 = scmp.ne.s32.totalorder %s149, %s150
    %p164 = scmp.eq.s32.totalorder %s27, 3
    %p165 = por %p163, %p164
    %p167 = scmp.ne.s32.totalorder %s150, %s166
    %p168 = scmp.eq.s32.totalorder %s27, 0
    %p169 = por %p167, %p168
    %s170 = ssub.s32 %s28, %s40
    %p171 = scmp.eq.s32.totalorder %s170, 0
    %s173 = sadd.s32 %s172, 1
    %s174 = scalar_select %p171, %s172, %s173
    %p177 = pneg %p171
    %p178 = scmp.eq.s32.totalorder %s21, 3
    %p179 = por %p177, %p178
    %p180 = scmp.ne.s32.totalorder %s172, %s175
    %p181 = scmp.eq.s32.totalorder %s21, 0
    %p182 = por %p180, %p181
    %p183 = scmp.ne.s32.totalorder %s172, %s175
    %p184 = scmp.eq.s32.totalorder %s26, 3
    %p185 = por %p183, %p184
    %p186 = scmp.ne.s32.totalorder %s175, %s176
    %p187 = scmp.eq.s32.totalorder %s26, 0
    %p188 = por %p186, %p187
    %p189 = scmp.ne.s32.totalorder %s175, %s176
    %p190 = scmp.eq.s32.totalorder %s27, 3
    %p191 = por %p189, %p190
    %p193 = scmp.ne.s32.totalorder %s176, %s192
    %p194 = scmp.eq.s32.totalorder %s27, 0
    %p195 = por %p193, %p194
    %p196 = scmp.le.s32.totalorder 1, %s21
    %p197 = scmp.lt.s32.totalorder %s21, 5
    %p198 = pnand %p196, %p197
    %p199 = pneg %p198
    // Predicated region
    $region9: #{tpu_custom_call.1} parent=5 // pred_check
      _
    $region10: #{tpu_custom_call.1} parent=5 // pred_check_branch
      %201 = sbr.rel (%p198) target = $region12
    $region11: #{tpu_custom_call.1} parent=5 // pred_region
      %s202 = ssub.s32 %s21, 1
      // Predicated region
      $region13: #{tpu_custom_call.1} parent=11 // pred_check
        %p203 = pneg %p110
      $region14: #{tpu_custom_call.1} parent=11 // pred_check_branch
        %205 = sbr.rel (%p203) target = $region16
      $region15: #{tpu_custom_call.1} parent=11 // pred_region
        _
      $region16: #{tpu_custom_call.1} parent=11 // pred_fallthru
        _
    $region12: #{tpu_custom_call.1} parent=5 // pred_fallthru
      _
    %p206 = scmp.lt.s32.totalorder %s21, 4
    // Predicated region
    $region17: #{tpu_custom_call.1} parent=5 // pred_check
      %p207 = pneg %p206
    $region18: #{tpu_custom_call.1} parent=5 // pred_check_branch
      %209 = sbr.rel (%p207) target = $region20
    $region19: #{tpu_custom_call.1} parent=5 // pred_region
      // Predicated region
      $region21: #{tpu_custom_call.1} parent=19 // pred_check
        %p210 = pneg %p55
      $region22: #{tpu_custom_call.1} parent=19 // pred_check_branch
        %212 = sbr.rel (%p210) target = $region24
      $region23: #{tpu_custom_call.1} parent=19 // pred_region
        %s213 = smul.u32 2, %s29
        %p214 = scmp.lt.s32.totalorder %s28, 1
        %s215 = scalar_select %p214, %s28, 1
        %p216 = scmp.lt.s32.totalorder %s213, 3
        %s217 = scalar_select %p216, %s213, 3
        %s218 = smul.addr %s215, 4
        %s219 = sadd.s32 %s217, %s218
        %s220 = smul.addr %s219, 8
        %s221 = scalar_lea.vmem %s1, %s220
        %s222 = smul.u32 2, %s29
      $region24: #{tpu_custom_call.1} parent=19 // pred_fallthru
        _
      // Predicated region
      $region25: #{tpu_custom_call.1} parent=19 // pred_check
        %p223 = pneg %p83
      $region26: #{tpu_custom_call.1} parent=19 // pred_check_branch
        %225 = sbr.rel (%p223) target = $region28
      $region27: #{tpu_custom_call.1} parent=19 // pred_region
        %s226 = smul.u32 2, %s29
        %p227 = scmp.lt.s32.totalorder %s28, 1
        %s228 = scalar_select %p227, %s28, 1
        %p229 = scmp.lt.s32.totalorder %s226, 3
        %s230 = scalar_select %p229, %s226, 3
        %s231 = smul.addr %s228, 4
        %s232 = sadd.s32 %s230, %s231
        %s233 = smul.addr %s232, 8
        %s234 = scalar_lea.vmem %s2, %s233
        %s235 = smul.u32 2, %s29
      $region28: #{tpu_custom_call.1} parent=19 // pred_fallthru
        _
    $region20: #{tpu_custom_call.1} parent=5 // pred_fallthru
      _
    %p236 = scmp.le.s32.totalorder 1, %s21
    %p237 = scmp.lt.s32.totalorder %s21, 5
    %p238 = pnand %p236, %p237
    %p239 = pneg %p238
    // Predicated region
    $region29: #{tpu_custom_call.1} parent=5 // pred_check
      _
    $region30: #{tpu_custom_call.1} parent=5 // pred_check_branch
      %241 = sbr.rel (%p238) target = $region32
    $region31: #{tpu_custom_call.1} parent=5 // pred_region
      %s242 = ssub.s32 %s21, 1
      %s243 = smul.u32 2, %s31
      %p244 = scmp.lt.s32.totalorder %s30, 1
      %s245 = scalar_select %p244, %s30, 1
      %p246 = scmp.lt.s32.totalorder %s243, 3
      %s247 = scalar_select %p246, %s243, 3
      %s248 = smul.addr %s245, 4
      %s249 = sadd.s32 %s247, %s248
      %s250 = smul.addr %s249, 8
      %s251 = scalar_lea.vmem %s1, %s250
      %p252 = pneg %p61
      %p253 = pneg %p58
      %s254 = smul.u32 2, %s31
      %p255 = scmp.lt.s32.totalorder %s30, 1
      %s256 = scalar_select %p255, %s30, 1
      %p257 = scmp.lt.s32.totalorder %s254, 3
      %s258 = scalar_select %p257, %s254, 3
      %s259 = smul.addr %s256, 4
      %s260 = sadd.s32 %s258, %s259
      %s261 = smul.addr %s260, 8
      %s262 = scalar_lea.vmem %s2, %s261
      %p263 = pneg %p89
      %p264 = pneg %p86
      %p265 = pneg %p110
      %p266 = pneg %p107
      %p267 = pneg %p136
      %p268 = pneg %p133
      %p269 = scmp.lt.s32.totalorder %s30, 1
      %s270 = scalar_select %p269, %s30, 1
      %s271 = scalar_lea.vmem %s4, %s270
      %p272 = pneg %p162
      %p273 = pneg %p159
      %p274 = scmp.lt.s32.totalorder %s30, 1
      %s275 = scalar_select %p274, %s30, 1
      %s276 = scalar_lea.vmem %s5, %s275
      %p277 = pneg %p188
      %p278 = pneg %p185
      %p279 = scmp.lt.s32.totalorder %s30, 1
      %s280 = scalar_select %p279, %s30, 1
      %s281 = scalar_lea.vmem %s6, %s280
      %s282 = smul.u32 2, %s31
      %p283 = scmp.lt.s32.totalorder %s30, 1
      %s284 = scalar_select %p283, %s30, 1
      %p285 = scmp.lt.s32.totalorder %s282, 3
      %s286 = scalar_select %p285, %s282, 3
      %s287 = smul.addr %s284, 4
      %s288 = sadd.s32 %s286, %s287
      %s289 = smul.addr %s288, 8
      %s290 = scalar_lea.vmem %s1, %s289
      %s291 = smul.u32 2, %s31
      %s292 = smul.u32 2, %s31
      %p293 = scmp.lt.s32.totalorder %s30, 1
      %s294 = scalar_select %p293, %s30, 1
      %p295 = scmp.lt.s32.totalorder %s292, 3
      %s296 = scalar_select %p295, %s292, 3
      %s297 = smul.addr %s294, 4
      %s298 = sadd.s32 %s296, %s297
      %s299 = smul.addr %s298, 8
      %s300 = scalar_lea.vmem %s2, %s299
      %s301 = smul.u32 2, %s31
      %p302 = scmp.lt.s32.totalorder %s30, 1
      %s303 = scalar_select %p302, %s30, 1
      %s304 = scalar_lea.vmem %s4, %s303
      %p305 = scmp.lt.s32.totalorder %s30, 1
      %s306 = scalar_select %p305, %s30, 1
      %s307 = scalar_lea.vmem %s5, %s306
      %p308 = scmp.lt.s32.totalorder %s30, 1
      %s309 = scalar_select %p308, %s30, 1
      %s310 = scalar_lea.vmem %s6, %s309
      %v311 = vld [vmem:[%s290] sm:$0xff]
      %v312 = vld [vmem:[%s290 + $0x8] sm:$0xff]
      %v313 = vld [vmem:[%s300] sm:$0xff]
      %v314 = vld [vmem:[%s300 + $0x8] sm:$0xff]
      %s315 = smul.u32 %s31, 16
      %v316 = vlaneseq
      %v317 = vshrl.u32 %v316, 7
      %v318 = vadd.s32 %v317, 8
      %v319 = vstv %s315
      %v320 = vadd.s32 %v319, %v317
      %v321 = vadd.s32 %v319, %v318
      %vm322 = vcmp.lt.s32.totalorder %v320, 31
      %vm323 = vcmp.lt.s32.totalorder %v321, 31
      %324 = vmax.xlane.f32.xlu0 %v311
      %v325 = vpop.xlane.xlu0 %324
      %326 = vmax.xlane.f32.xlu0 %v312
      %v327 = vpop.xlane.xlu0 %326
      %v328 = vsub.f32 %v311, %v325
      %v329 = vsub.f32 %v312, %v327
      %v330 = vmul.f32 %v328, 1.442695
      %v331 = vpow.pop %v330
      %v332 = vmul.f32 %v329, 1.442695
      %v333 = vpow.pop %v332
      %334 = vadd.xlane.f32.xlu0 %v331
      %v335 = vpop.xlane.xlu0 %334
      %336 = vadd.xlane.f32.xlu0 %v333
      %v337 = vpop.xlane.xlu0 %336
      %v338 = vlog2.pop %v335
      %v339 = vmul.f32 %v338, 0.6931472
      %v340 = vlog2.pop %v337
      %v341 = vmul.f32 %v340, 0.6931472
      %v342 = vadd.f32 %v325, %v339
      %v343 = vadd.f32 %v327, %v341
      %v344 = vlaneseq
      %v345 = vand.u32 %v344, 127
      %346 = vset.pattern.permute.xlu0 0
      %347 = vperm.xlu0 %346, %v313
      %v348 = vpop.permute.xlu0 %347
      %349 = vset.pattern.permute.xlu0 0
      %350 = vperm.xlu0 %349, %v314
      %v351 = vpop.permute.xlu0 %350
      %vm352 = vcmp.eq.s32.totalorder %v345, %v348
      %vm353 = vcmp.eq.s32.totalorder %v345, %v351
      %v354 = vsel %vm352, %v311, 0.0
      %v355 = vsel %vm353, %v312, 0.0
      %356 = vadd.xlane.f32.xlu0 %v354
      %v357 = vpop.xlane.xlu0 %356
      %358 = vadd.xlane.f32.xlu0 %v355
      %v359 = vpop.xlane.xlu0 %358
      %v360 = vsub.f32 %v342, %v357
      %v361 = vsub.f32 %v343, %v359
      %v362 = vsel %vm322, %v360, 0.0
      %v363 = vsel %vm323, %v361, 0.0
      %vm364 = vcmask 7168
      %v365 = vsel %vm364, %v362, 0.0
      %v366 = vsel %vm364, %v363, 0.0
      %v367 = vadd.f32 %v365, %v366
      %368 = vadd.xlane.f32.xlu0 %v367
      %v369 = vpop.xlane.xlu0 %368
      %v370 = vrot.slane %v369, 4
      %v371 = vadd.f32 %v369, %v370
      %v372 = vrot.slane %v371, 2
      %v373 = vadd.f32 %v371, %v372
      %v374 = vrot.slane %v373, 1
      %v375 = vadd.f32 %v373, %v374
      %s376 = vtos %v375
      %p377 = scmp.eq.s32.totalorder %s31, 0
      // Predicated region
      $region33: #{tpu_custom_call.1} parent=31 // pred_check
        %p378 = pneg %p377
      $region34: #{tpu_custom_call.1} parent=31 // pred_check_branch
        %380 = sbr.rel (%p378) target = $region36
      $region35: #{tpu_custom_call.1} parent=31 // pred_region
        %vm381 = vcmask 0
        %382 = vst.msk [vmem:[%s304] sm:$0x1] %vm381, 0.0
      $region36: #{tpu_custom_call.1} parent=31 // pred_fallthru
        _
      %v383 = vld [vmem:[%s304] sm:$0x1]
      %v384 = vstv %s376
      %v385 = vadd.f32 %v383, %v384
      %vm386 = vcmask 0
      %387 = vst.msk [vmem:[%s304] sm:$0x1] %vm386, %v385
      %p388 = scmp.eq.s32.totalorder %s31, 1
      // Predicated region
      $region37: #{tpu_custom_call.1} parent=31 // pred_check
        %p389 = pneg %p388
      $region38: #{tpu_custom_call.1} parent=31 // pred_check_branch
        %391 = sbr.rel (%p389) target = $region40
      $region39: #{tpu_custom_call.1} parent=31 // pred_region
        %s392 = sld [smem:[#allocation3 + %s30]]
        %v393 = vld [vmem:[%s3] sm:$0x1]
        %vm394 = vcmp.ne.s32.totalorder %v393, 0
        %396 = vst [vmem:[#allocation1] sm:$0xff] %v312
        %s397 = scalar_lea.vmem [#allocation1], 7
        %v398 = vld [vmem:[%s397] ss:$9 sm:$0xff]
        %v400 = vsel %vm394, %v398, -1e+30
        %vm401 = vcmask 1040384
        %v402 = vsel %vm401, %v400, -inf
        %403 = vmax.xlane.f32.xlu0 %v402
        %v404 = vpop.xlane.xlu0 %403
        %v405 = vsub.f32 %v400, %v404
        %v406 = vmul.f32 %v405, 1.442695
        %v407 = vpow.pop %v406
        %v408 = vsel %vm401, %v407, 0.0
        %409 = vadd.xlane.f32.xlu0 %v408
        %v410 = vpop.xlane.xlu0 %409
        %v411 = vlog2.pop %v410
        %v412 = vmul.f32 %v411, 0.6931472
        %v413 = vadd.f32 %v404, %v412
        %v414 = vstv %s392
        %vm415 = vcmp.eq.s32.totalorder %v345, %v414
        %v416 = vsel %vm415, %v400, 0.0
        %v417 = vsel %vm401, %v416, 0.0
        %418 = vadd.xlane.f32.xlu0 %v417
        %v419 = vpop.xlane.xlu0 %418
        %v420 = vsub.f32 %v413, %v419
        %421 = vst.msk [vmem:[%s307] sm:$0x1] %vm386, %v420
        %vm422 = vcmask 1047559
        %v423 = vsel %vm422, %v312, -inf
        %424 = vmax.xlane.f32.xlu0 %v423
        %v425 = vpop.xlane.xlu0 %424
        %vm426 = vcmp.ge.f32.partialorder %v312, %v425
        %v427 = vsel %vm426, %v345, 128
        %v428 = vsel %vm422, %v427, 2147483647
        %v429 = vand.u32 %v428, 65535
        %v430 = vshra.s32 %v428, 16
        %v431 = vcvt.s32.f32 %v429
        %v432 = vcvt.s32.f32 %v430
        %433 = vmin.xlane.f32.xlu0 %v432
        %v434 = vpop.xlane.xlu0 %433
        %vm435 = vcmp.eq.f32.partialorder %v432, %v434
        %v436 = vsel %vm435, %v431, inf
        %437 = vmin.xlane.f32.xlu0 %v436
        %v438 = vpop.xlane.xlu0 %437
        %v439 = vcvt.f32.s32 %v438
        %v440 = vcvt.f32.s32 %v434
        %v441 = vshll.u32 %v440, 16
        %v442 = vadd.s32 %v441, %v439
        %vm443 = vcmp.eq.s32.totalorder %v442, %v414
        %v444 = vsel %vm443, 1, 0
        %vm445 = vcmask 7175
        %446 = vst.msk [vmem:[%s310 - $0x7] sm:$0x80] %vm445, %v444
      $region40: #{tpu_custom_call.1} parent=31 // pred_fallthru
        _
      %p447 = scmp.lt.s32.totalorder %s30, 1
      %s448 = scalar_select %p447, %s30, 1
      %s449 = scalar_lea.vmem %s4, %s448
      %p450 = scmp.lt.s32.totalorder %s30, 1
      %s451 = scalar_select %p450, %s30, 1
      %s452 = scalar_lea.vmem %s5, %s451
      %p453 = scmp.lt.s32.totalorder %s30, 1
      %s454 = scalar_select %p453, %s30, 1
      %s455 = scalar_lea.vmem %s6, %s454
      // Predicated region
      $region41: #{tpu_custom_call.1} parent=31 // pred_check
        %p456 = pneg %p133
      $region42: #{tpu_custom_call.1} parent=31 // pred_check_branch
        %458 = sbr.rel (%p456) target = $region44
      $region43: #{tpu_custom_call.1} parent=31 // pred_region
        _
      $region44: #{tpu_custom_call.1} parent=31 // pred_fallthru
        _
      // Predicated region
      $region45: #{tpu_custom_call.1} parent=31 // pred_check
        %p459 = pneg %p159
      $region46: #{tpu_custom_call.1} parent=31 // pred_check_branch
        %461 = sbr.rel (%p459) target = $region48
      $region47: #{tpu_custom_call.1} parent=31 // pred_region
        _
      $region48: #{tpu_custom_call.1} parent=31 // pred_fallthru
        _
      // Predicated region
      $region49: #{tpu_custom_call.1} parent=31 // pred_check
        %p462 = pneg %p185
      $region50: #{tpu_custom_call.1} parent=31 // pred_check_branch
        %464 = sbr.rel (%p462) target = $region52
      $region51: #{tpu_custom_call.1} parent=31 // pred_region
        _
      $region52: #{tpu_custom_call.1} parent=31 // pred_fallthru
        _
    $region32: #{tpu_custom_call.1} parent=5 // pred_fallthru
      _
    %p465 = scmp.le.s32.totalorder 2, %s21
    // Predicated region
    $region53: #{tpu_custom_call.1} parent=5 // pred_check
      %p466 = pneg %p465
    $region54: #{tpu_custom_call.1} parent=5 // pred_check_branch
      %468 = sbr.rel (%p466) target = $region56
    $region55: #{tpu_custom_call.1} parent=5 // pred_region
      %s469 = ssub.s32 %s21, 2
      // Predicated region
      $region57: #{tpu_custom_call.1} parent=55 // pred_check
        %p470 = pneg %p139
      $region58: #{tpu_custom_call.1} parent=55 // pred_check_branch
        %472 = sbr.rel (%p470) target = $region60
      $region59: #{tpu_custom_call.1} parent=55 // pred_region
        %p473 = scmp.lt.s32.totalorder %s32, 1
        %s474 = scalar_select %p473, %s32, 1
        %s475 = scalar_lea.vmem %s4, %s474
      $region60: #{tpu_custom_call.1} parent=55 // pred_fallthru
        _
      // Predicated region
      $region61: #{tpu_custom_call.1} parent=55 // pred_check
        %p476 = pneg %p165
      $region62: #{tpu_custom_call.1} parent=55 // pred_check_branch
        %478 = sbr.rel (%p476) target = $region64
      $region63: #{tpu_custom_call.1} parent=55 // pred_region
        %p479 = scmp.lt.s32.totalorder %s32, 1
        %s480 = scalar_select %p479, %s32, 1
        %s481 = scalar_lea.vmem %s5, %s480
      $region64: #{tpu_custom_call.1} parent=55 // pred_fallthru
        _
      // Predicated region
      $region65: #{tpu_custom_call.1} parent=55 // pred_check
        %p482 = pneg %p191
      $region66: #{tpu_custom_call.1} parent=55 // pred_check_branch
        %484 = sbr.rel (%p482) target = $region68
      $region67: #{tpu_custom_call.1} parent=55 // pred_region
        %p485 = scmp.lt.s32.totalorder %s32, 1
        %s486 = scalar_select %p485, %s32, 1
        %s487 = scalar_lea.vmem %s6, %s486
      $region68: #{tpu_custom_call.1} parent=55 // pred_fallthru
        _
    $region56: #{tpu_custom_call.1} parent=5 // pred_fallthru
      _
  $region6: #{tpu_custom_call.1} parent=0 // loop_footer
    %s25 = sadd.s32 1, %s21
  $region7: #{tpu_custom_call.1} parent=0 // loop_footer_branch
    %20 = sbr.rel target = $region3
  $region8: #{tpu_custom_call.1} parent=0 // loop_exit
    _

</llo_original>
